<compile_context>
chip_gen: v7x
topology: tpu7x:2x2x1
jax: 0.10.0
libtpu: 0.0.40
codegen_flags: <defaults>
</compile_context>

<pallas_src>
import functools

import jax
import jax.numpy as jnp
from jax import lax
from jax.experimental import pallas as pl
from jax.experimental.pallas import tpu as pltpu


def _dwblock_kernel(x_ref, wdw_ref, b1_ref, wpw_ref, b2_ref, out_ref, *,
                    H, W, Cin, Ho, Wo, Cout, stride, compute_dtype, mxu_dtype):
    """Fused depthwise-separable block, lane-packed layout.

    x_ref  : (BT, H, W*Cin)     input; W and Cin packed on the lane axis
    wdw_ref: (3, 3, W*Cin)      depthwise weights; BN1 scale folded in and
                                width-boundary taps pre-zeroed (padding=1)
    b1_ref : (1, W*Cin)         folded BN1 bias
    wpw_ref: (W*Cin, Wo*Cout)   block-diagonal 1x1 weights; BN2 scale and the
                                conv stride folded in (mxu_dtype)
    b2_ref : (1, Wo*Cout)       folded BN2 bias (f32)
    out_ref: (BT, Ho, Wo*Cout)  lane-dense output slab
    """
    BT = x_ref.shape[0]
    WC = W * Cin

    x = x_ref[...].astype(compute_dtype)      # (BT, H, W*Cin)
    wdw = wdw_ref[...]                        # (3, 3, W*Cin), compute_dtype
    b1 = b1_ref[...].reshape(1, 1, WC)        # compute_dtype

    # ---- depthwise 3x3 -----------------------------------------------------
    # W-direction taps: lane rotations on the XLU.  Wrapped (out-of-image)
    # columns are multiplied by zeros pre-baked into wdw -> no column mask.
    x_m1 = pltpu.roll(x, shift=Cin, axis=2)        # samples column j - 1
    x_p1 = pltpu.roll(x, shift=WC - Cin, axis=2)   # samples column j + 1

    # H-direction taps: sublane rotations + hoisted row masks (padding=1
    # rows).  Masks built once from one iota, applied with one select each.
    ri = lax.broadcasted_iota(jnp.int32, (1, H, 1), 1)
    row_ok_up = ri >= 1            # tap at row i-1 is inside the image
    row_ok_dn = ri < H - 1         # tap at row i+1 is inside the image
    zero = jnp.zeros((), compute_dtype)

    # Running accumulator: only x, x_m1, x_p1, one partial and acc are live
    # at any point (vs. materializing all three row-partials and shifting).
    part = x_m1 * wdw[0, 0] + x * wdw[0, 1] + x_p1 * wdw[0, 2]
    acc = jnp.where(row_ok_up, pltpu.roll(part, shift=1, axis=1), zero)
    acc = acc + (x_m1 * wdw[1, 0] + x * wdw[1, 1] + x_p1 * wdw[1, 2])
    part = x_m1 * wdw[2, 0] + x * wdw[2, 1] + x_p1 * wdw[2, 2]
    acc = acc + jnp.where(row_ok_dn, pltpu.roll(part, shift=H - 1, axis=1),
                          zero)

    # BN1 (scale already folded into wdw) + ReLU on the VPU.
    h = jnp.maximum(acc + b1, zero)

    if stride == 2:
        # TODO(synk): fold the even-row decimation into the depthwise stage to
        #             avoid this strided sublane slice on downsample blocks.
        h = h.reshape(BT, Ho, stride, WC)[:, :, 0, :]

    # ---- pointwise 1x1 + BN2 + ReLU -----------------------------------------
    # One lane-packed MXU matmul (bf16 operands, f32 accumulation); the result
    # is already in the lane-dense output layout -> unmasked vst.
    hm = h.reshape(BT * Ho, WC).astype(mxu_dtype)
    y = jnp.dot(hm, wpw_ref[...], preferred_element_type=jnp.float32)
    y = jnp.maximum(y + b2_ref[...], 0.0)
    out_ref[...] = y.reshape(BT, Ho, Wo * Cout).astype(out_ref.dtype)


def _fold_bn(bn, eps=1e-5):
    s = bn["gamma"] / jnp.sqrt(bn["var"] + eps)
    b = bn["beta"] - bn["mean"] * s
    return s, b


def _vmem_capacity_bytes():
    """Physical per-core VMEM, generation-aware (64 MiB fallback = v7x)."""
    try:
        return int(pltpu.get_tpu_info().vmem_capacity_bytes)
    except Exception:
        return 64 * 1024 * 1024


def _pick_batch_block(N, per_bt_bytes, io_per_bt_bytes, budget_bytes):
    """Largest divisor of N whose per-step block fits the VMEM budget, while
    keeping the grid >= 2 steps when possible (v7x megacore sharding) and the
    per-step I/O slab O(4 MiB)."""
    divisors = [d for d in range(1, N + 1) if N % d == 0]
    fitting = [d for d in divisors if d * per_bt_bytes <= budget_bytes] or [1]
    pref = [d for d in fitting if N // d >= 2] or fitting
    good = [d for d in pref if d * io_per_bt_bytes <= 4 * 1024 * 1024]
    return max(good) if good else min(pref)


def dwblock_pallas(x_nhwc, w_dw, w_pw, bn1, bn2, *, downsample=False,
                   out_dtype=jnp.float32, mxu_dtype=jnp.bfloat16,
                   compute_dtype=jnp.float32, batch_block=None):
    """x_nhwc: (N, H, W, Cin); w_dw: (3, 3, Cin); w_pw: (Cin, Cout);
    bn1/bn2: dicts with gamma, beta, mean, var (inference-mode BN)."""
    eps = 1e-5
    stride = 2 if downsample else 1
    N, H, W, Cin = x_nhwc.shape
    Cout = w_pw.shape[1]
    if stride == 2 and (H % 2 or W % 2):
        raise NotImplementedError("downsample path assumes even H, W")
    Ho = (H - 1) // stride + 1        # == (H + 2*1 - 3)//stride + 1
    Wo = (W - 1) // stride + 1
    WC, WoC = W * Cin, Wo * Cout

    # Lane-packed path is sized for MobileNet's small-channel blocks.
    if WC > 4096 or WoC > 4096:
        # TODO(synk): channels-on-lanes MXU path for large Cin/Cout stages.
        raise NotImplementedError("lane-packed path sized for small W*C")

    s1, b1 = _fold_bn(bn1, eps)
    s2, b2 = _fold_bn(bn2, eps)

    # Packed depthwise weights (3, 3, W*Cin): BN1 scale folded in, and taps
    # that would read outside the width zeroed -> padding never touches HBM.
    j_of_p = jnp.repeat(jnp.arange(W), Cin)           # column id per packed lane
    taps = []
    for kh in range(3):
        for kw in range(3):
            dw = kw - 1
            valid = ((j_of_p + dw >= 0) & (j_of_p + dw < W)).astype(jnp.float32)
            taps.append(jnp.tile(w_dw[kh, kw] * s1, W) * valid)
    w_packed = jnp.stack(taps).reshape(3, 3, WC).astype(compute_dtype)
    b1_packed = jnp.tile(b1, W).reshape(1, WC).astype(compute_dtype)

    # Block-diagonal pointwise weight (W*Cin, Wo*Cout) with BN2 scale and the
    # conv stride folded in: wbd[j*Cin+c, jo*Cout+o] = wpw[c,o]*s2[o] iff
    # j == stride*jo, else 0.  Shipped in mxu_dtype (bf16 by default).
    sel = (jnp.arange(W)[:, None] == stride * jnp.arange(Wo)[None, :])
    wbd = jnp.einsum("co,jJ->jcJo", w_pw * s2[None, :],
                     sel.astype(jnp.float32)).reshape(WC, WoC)
    wbd = wbd.astype(mxu_dtype)
    b2_packed = jnp.tile(b2, Wo).reshape(1, WoC)      # f32 bias

    x_packed = x_nhwc.reshape(N, H, WC)               # free XLA view reshape

    # ---- VMEM budgeting & batch-block selection (generation-aware) ----------
    xb = jnp.dtype(x_nhwc.dtype).itemsize
    cb = jnp.dtype(compute_dtype).itemsize
    mb = jnp.dtype(mxu_dtype).itemsize
    ob = jnp.dtype(out_dtype).itemsize

    vmem_cap = _vmem_capacity_bytes()
    # Never request the whole physical VMEM (v7x only has 64 MiB): ~75% of
    # capacity, capped at 96 MiB on the 128-MiB parts (v5e/v6e).
    vmem_limit = int(min((vmem_cap * 3) // 4, 96 * 1024 * 1024))

    # Per-batch-element cost: double-buffered I/O blocks PLUS the ~6 live
    # (H, W*Cin) intermediates the body keeps (x, two lane-rolled copies,
    # partial, acc, h) and the matmul operand/result.
    io_per_bt = 2 * (H * WC * xb + Ho * WoC * ob)
    live_per_bt = 6 * H * WC * cb + Ho * WoC * 4 + Ho * WC * mb
    per_bt = io_per_bt + live_per_bt
    fixed = 2 * ((9 * WC + WC) * cb + WC * WoC * mb + WoC * 4)
    budget = max((vmem_limit * 7) // 10 - fixed, per_bt)

    if batch_block is None:
        batch_block = _pick_batch_block(N, per_bt, io_per_bt, budget)
    BT = batch_block
    assert N % BT == 0, (N, BT)
    # TODO(synk): pad N (or use a ragged last block) instead of falling back
    #             to BT=1 when N is prime/awkward.

    kernel = functools.partial(_dwblock_kernel, H=H, W=W, Cin=Cin, Ho=Ho,
                               Wo=Wo, Cout=Cout, stride=stride,
                               compute_dtype=compute_dtype,
                               mxu_dtype=mxu_dtype)

    out_flat = pl.pallas_call(
        kernel,
        out_shape=jax.ShapeDtypeStruct((N, Ho, WoC), out_dtype),
        grid_spec=pltpu.PrefetchScalarGridSpec(
            num_scalar_prefetch=0,
            grid=(N // BT,),
            in_specs=[
                pl.BlockSpec((BT, H, WC), lambda b: (b, 0, 0)),
                pl.BlockSpec((3, 3, WC), lambda b: (0, 0, 0)),
                pl.BlockSpec((1, WC), lambda b: (0, 0)),
                pl.BlockSpec((WC, WoC), lambda b: (0, 0)),
                pl.BlockSpec((1, WoC), lambda b: (0, 0)),
            ],
            out_specs=pl.BlockSpec((BT, Ho, WoC), lambda b: (b, 0, 0)),
        ),
        compiler_params=pltpu.CompilerParams(
            dimension_semantics=("parallel",),
            vmem_limit_bytes=vmem_limit),
    )(x_packed, w_packed, b1_packed, wbd, b2_packed)

    # Unpack the lane-dense slab back to NHWC outside the kernel.
    return out_flat.reshape(N, Ho, Wo, Cout)


def dwblock_reference(x_nhwc, w_dw, w_pw, bn1, bn2, *, downsample=False):
    """Pure-JAX reference (mirrors the PyTorch module in eval mode)."""
    eps = 1e-5
    stride = 2 if downsample else 1
    Cin = x_nhwc.shape[-1]
    w_dw_hwio = w_dw.reshape(3, 3, 1, Cin)
    out = lax.conv_general_dilated(
        x_nhwc, w_dw_hwio, window_strides=(stride, stride),
        padding=((1, 1), (1, 1)),
        dimension_numbers=("NHWC", "HWIO", "NHWC"),
        feature_group_count=Cin)
    out = (out - bn1["mean"]) / jnp.sqrt(bn1["var"] + eps) * bn1["gamma"] + bn1["beta"]
    out = jnp.maximum(out, 0.0)
    out = jnp.einsum("nhwc,co->nhwo", out, w_pw)
    out = (out - bn2["mean"]) / jnp.sqrt(bn2["var"] + eps) * bn2["gamma"] + bn2["beta"]
    out = jnp.maximum(out, 0.0)
    return out


if __name__ == "__main__":
    # dwBlock(nin=8, nout=16, alpha=1.0, downsample=False)
    nin_base, nout_base, alpha = 8, 16, 1.0
    Cin = int(nin_base * alpha)
    Cout = int(nout_base * alpha)
    N, H, W = 2, 16, 16
    downsample = False

    key = jax.random.PRNGKey(0)
    k = jax.random.split(key, 8)
    x_nchw = jax.random.normal(k[0], (N, Cin, H, W), jnp.float32)  # PyTorch layout
    x_nhwc = jnp.transpose(x_nchw, (0, 2, 3, 1))                   # kernel layout

    # conv1: depthwise 3x3, groups=Cin -> torch weight (Cin, 1, 3, 3); here (3,3,Cin)
    w_dw = jax.random.normal(k[1], (3, 3, Cin), jnp.float32) * 0.2
    # conv2: 1x1, no bias -> torch weight (Cout, Cin, 1, 1); here (Cin, Cout)
    w_pw = jax.random.normal(k[2], (Cin, Cout), jnp.float32) * 0.2

    bn1 = dict(gamma=1.0 + 0.1 * jax.random.normal(k[3], (Cin,), jnp.float32),
               beta=0.1 * jax.random.normal(k[4], (Cin,), jnp.float32),
               mean=0.05 * jax.random.normal(k[5], (Cin,), jnp.float32),
               var=jnp.abs(jax.random.normal(k[6], (Cin,), jnp.float32)) * 0.5 + 0.5)
    bn2 = dict(gamma=1.0 + 0.1 * jax.random.normal(k[7], (Cout,), jnp.float32),
               beta=jnp.linspace(-0.1, 0.1, Cout, dtype=jnp.float32),
               mean=jnp.linspace(-0.05, 0.05, Cout, dtype=jnp.float32),
               var=jnp.linspace(0.5, 1.5, Cout, dtype=jnp.float32))

    out = dwblock_pallas(x_nhwc, w_dw, w_pw, bn1, bn2, downsample=downsample)
    out = jax.block_until_ready(out)

    ref = dwblock_reference(x_nhwc, w_dw, w_pw, bn1, bn2, downsample=downsample)
    assert out.shape == ref.shape, (out.shape, ref.shape)
    # bf16 MXU operands (f32 accumulation) -> loosened tolerance vs. pure f32.
    max_err = float(jnp.max(jnp.abs(out - ref)))
    assert jnp.allclose(out, ref, atol=3e-2, rtol=3e-2), max_err

    print("KERNEL_OK")
</pallas_src>

<mosaic_0001>
module attributes {stable_mosaic.version = 11 : i64} {
  func.func @_dwblock_kernel(%arg0: i32, %arg1: memref<1x16x128xf32, #tpu.memory_space<vmem>>, %arg2: memref<3x3x128xf32, #tpu.memory_space<vmem>>, %arg3: memref<1x128xf32, #tpu.memory_space<vmem>>, %arg4: memref<128x256xbf16, #tpu.memory_space<vmem>>, %arg5: memref<1x256xf32, #tpu.memory_space<vmem>>, %arg6: memref<1x16x256xf32, #tpu.memory_space<vmem>>) attributes {dimension_semantics = [#tpu.dimension_semantics<parallel>], iteration_bounds = array<i64: 2>, scalar_prefetch = 0 : i64, scratch_operands = 0 : i64, tpu.core_type = #tpu.core_type<tc>, window_params = [{transform_indices = @transform_0, window_bounds = array<i64: 1, 16, 128>}, {pipeline_mode = #tpu.pipeline_mode<synchronous>, transform_indices = @transform_1, window_bounds = array<i64: 3, 3, 128>}, {pipeline_mode = #tpu.pipeline_mode<synchronous>, transform_indices = @transform_2, window_bounds = array<i64: 1, 128>}, {pipeline_mode = #tpu.pipeline_mode<synchronous>, transform_indices = @transform_3, window_bounds = array<i64: 128, 256>}, {pipeline_mode = #tpu.pipeline_mode<synchronous>, transform_indices = @transform_4, window_bounds = array<i64: 1, 256>}, {transform_indices = @transform_5, window_bounds = array<i64: 1, 16, 256>}]} {
    %c0 = arith.constant 0 : index
    %c0_0 = arith.constant 0 : index
    %c0_1 = arith.constant 0 : index
    %0 = vector.load %arg1[%c0, %c0_0, %c0_1] : memref<1x16x128xf32, #tpu.memory_space<vmem>>, vector<1x16x128xf32>
    %c0_2 = arith.constant 0 : index
    %c0_3 = arith.constant 0 : index
    %c0_4 = arith.constant 0 : index
    %1 = vector.load %arg2[%c0_2, %c0_3, %c0_4] : memref<3x3x128xf32, #tpu.memory_space<vmem>>, vector<3x3x128xf32>
    %c0_5 = arith.constant 0 : index
    %c0_6 = arith.constant 0 : index
    %2 = vector.load %arg3[%c0_5, %c0_6] : memref<1x128xf32, #tpu.memory_space<vmem>>, vector<1x128xf32>
    %3 = vector.shape_cast %2 : vector<1x128xf32> to vector<1x1x128xf32>
    %c8_i32 = arith.constant 8 : i32
    %4 = tpu.dynamic_rotate %0 by %c8_i32 dim 2 : vector<1x16x128xf32>, i32 -> vector<1x16x128xf32>
    %c120_i32 = arith.constant 120 : i32
    %5 = tpu.dynamic_rotate %0 by %c120_i32 dim 2 : vector<1x16x128xf32>, i32 -> vector<1x16x128xf32>
    %6 = tpu.iota {dimensions = array<i32: 1>} : vector<1x16x1xi32>
    %c1_i32 = arith.constant 1 : i32
    %7 = vector.broadcast %c1_i32 : i32 to vector<1x16x1xi32>
    %8 = arith.cmpi sge, %6, %7 : vector<1x16x1xi32>
    %c15_i32 = arith.constant 15 : i32
    %9 = vector.broadcast %c15_i32 : i32 to vector<1x16x1xi32>
    %10 = arith.cmpi slt, %6, %9 : vector<1x16x1xi32>
    %11 = vector.extract_strided_slice %1 {offsets = [0, 0, 0], sizes = [1, 1, 128], strides = [1, 1, 1]} : vector<3x3x128xf32> to vector<1x1x128xf32>
    %12 = vector.shape_cast %11 : vector<1x1x128xf32> to vector<128xf32>
    %13 = vector.shape_cast %12 : vector<128xf32> to vector<1x1x128xf32>
    %14 = vector.broadcast %13 : vector<1x1x128xf32> to vector<1x16x128xf32>
    %15 = arith.mulf %4, %14 : vector<1x16x128xf32>
    %16 = vector.extract_strided_slice %1 {offsets = [0, 1, 0], sizes = [1, 1, 128], strides = [1, 1, 1]} : vector<3x3x128xf32> to vector<1x1x128xf32>
    %17 = vector.shape_cast %16 : vector<1x1x128xf32> to vector<128xf32>
    %18 = vector.shape_cast %17 : vector<128xf32> to vector<1x1x128xf32>
    %19 = vector.broadcast %18 : vector<1x1x128xf32> to vector<1x16x128xf32>
    %20 = arith.mulf %0, %19 : vector<1x16x128xf32>
    %21 = arith.addf %15, %20 : vector<1x16x128xf32>
    %22 = vector.extract_strided_slice %1 {offsets = [0, 2, 0], sizes = [1, 1, 128], strides = [1, 1, 1]} : vector<3x3x128xf32> to vector<1x1x128xf32>
    %23 = vector.shape_cast %22 : vector<1x1x128xf32> to vector<128xf32>
    %24 = vector.shape_cast %23 : vector<128xf32> to vector<1x1x128xf32>
    %25 = vector.broadcast %24 : vector<1x1x128xf32> to vector<1x16x128xf32>
    %26 = arith.mulf %5, %25 : vector<1x16x128xf32>
    %27 = arith.addf %21, %26 : vector<1x16x128xf32>
    %c1_i32_7 = arith.constant 1 : i32
    %28 = tpu.dynamic_rotate %27 by %c1_i32_7 dim 1 : vector<1x16x128xf32>, i32 -> vector<1x16x128xf32>
    %cst = arith.constant 0.000000e+00 : f32
    %29 = vector.shape_cast %8 : vector<1x16x1xi1> to vector<1x16x1xi1>
    %30 = vector.broadcast %29 : vector<1x16x1xi1> to vector<1x16x128xi1>
    %31 = vector.broadcast %cst : f32 to vector<1x16x128xf32>
    %32 = arith.select %30, %28, %31 : vector<1x16x128xi1>, vector<1x16x128xf32>
    %33 = vector.extract_strided_slice %1 {offsets = [1, 0, 0], sizes = [1, 1, 128], strides = [1, 1, 1]} : vector<3x3x128xf32> to vector<1x1x128xf32>
    %34 = vector.shape_cast %33 : vector<1x1x128xf32> to vector<128xf32>
    %35 = vector.shape_cast %34 : vector<128xf32> to vector<1x1x128xf32>
    %36 = vector.broadcast %35 : vector<1x1x128xf32> to vector<1x16x128xf32>
    %37 = arith.mulf %4, %36 : vector<1x16x128xf32>
    %38 = vector.extract_strided_slice %1 {offsets = [1, 1, 0], sizes = [1, 1, 128], strides = [1, 1, 1]} : vector<3x3x128xf32> to vector<1x1x128xf32>
    %39 = vector.shape_cast %38 : vector<1x1x128xf32> to vector<128xf32>
    %40 = vector.shape_cast %39 : vector<128xf32> to vector<1x1x128xf32>
    %41 = vector.broadcast %40 : vector<1x1x128xf32> to vector<1x16x128xf32>
    %42 = arith.mulf %0, %41 : vector<1x16x128xf32>
    %43 = arith.addf %37, %42 : vector<1x16x128xf32>
    %44 = vector.extract_strided_slice %1 {offsets = [1, 2, 0], sizes = [1, 1, 128], strides = [1, 1, 1]} : vector<3x3x128xf32> to vector<1x1x128xf32>
    %45 = vector.shape_cast %44 : vector<1x1x128xf32> to vector<128xf32>
    %46 = vector.shape_cast %45 : vector<128xf32> to vector<1x1x128xf32>
    %47 = vector.broadcast %46 : vector<1x1x128xf32> to vector<1x16x128xf32>
    %48 = arith.mulf %5, %47 : vector<1x16x128xf32>
    %49 = arith.addf %43, %48 : vector<1x16x128xf32>
    %50 = arith.addf %32, %49 : vector<1x16x128xf32>
    %51 = vector.extract_strided_slice %1 {offsets = [2, 0, 0], sizes = [1, 1, 128], strides = [1, 1, 1]} : vector<3x3x128xf32> to vector<1x1x128xf32>
    %52 = vector.shape_cast %51 : vector<1x1x128xf32> to vector<128xf32>
    %53 = vector.shape_cast %52 : vector<128xf32> to vector<1x1x128xf32>
    %54 = vector.broadcast %53 : vector<1x1x128xf32> to vector<1x16x128xf32>
    %55 = arith.mulf %4, %54 : vector<1x16x128xf32>
    %56 = vector.extract_strided_slice %1 {offsets = [2, 1, 0], sizes = [1, 1, 128], strides = [1, 1, 1]} : vector<3x3x128xf32> to vector<1x1x128xf32>
    %57 = vector.shape_cast %56 : vector<1x1x128xf32> to vector<128xf32>
    %58 = vector.shape_cast %57 : vector<128xf32> to vector<1x1x128xf32>
    %59 = vector.broadcast %58 : vector<1x1x128xf32> to vector<1x16x128xf32>
    %60 = arith.mulf %0, %59 : vector<1x16x128xf32>
    %61 = arith.addf %55, %60 : vector<1x16x128xf32>
    %62 = vector.extract_strided_slice %1 {offsets = [2, 2, 0], sizes = [1, 1, 128], strides = [1, 1, 1]} : vector<3x3x128xf32> to vector<1x1x128xf32>
    %63 = vector.shape_cast %62 : vector<1x1x128xf32> to vector<128xf32>
    %64 = vector.shape_cast %63 : vector<128xf32> to vector<1x1x128xf32>
    %65 = vector.broadcast %64 : vector<1x1x128xf32> to vector<1x16x128xf32>
    %66 = arith.mulf %5, %65 : vector<1x16x128xf32>
    %67 = arith.addf %61, %66 : vector<1x16x128xf32>
    %c15_i32_8 = arith.constant 15 : i32
    %68 = tpu.dynamic_rotate %67 by %c15_i32_8 dim 1 : vector<1x16x128xf32>, i32 -> vector<1x16x128xf32>
    %cst_9 = arith.constant 0.000000e+00 : f32
    %69 = vector.shape_cast %10 : vector<1x16x1xi1> to vector<1x16x1xi1>
    %70 = vector.broadcast %69 : vector<1x16x1xi1> to vector<1x16x128xi1>
    %71 = vector.broadcast %cst_9 : f32 to vector<1x16x128xf32>
    %72 = arith.select %70, %68, %71 : vector<1x16x128xi1>, vector<1x16x128xf32>
    %73 = arith.addf %50, %72 : vector<1x16x128xf32>
    %74 = vector.broadcast %3 : vector<1x1x128xf32> to vector<1x16x128xf32>
    %75 = arith.addf %73, %74 : vector<1x16x128xf32>
    %cst_10 = arith.constant 0.000000e+00 : f32
    %76 = vector.broadcast %cst_10 : f32 to vector<1x16x128xf32>
    %77 = arith.maximumf %75, %76 : vector<1x16x128xf32>
    %78 = vector.shape_cast %77 : vector<1x16x128xf32> to vector<16x128xf32>
    %79 = arith.truncf %78 : vector<16x128xf32> to vector<16x128xbf16>
    %c0_11 = arith.constant 0 : index
    %c0_12 = arith.constant 0 : index
    %80 = vector.load %arg4[%c0_11, %c0_12] : memref<128x256xbf16, #tpu.memory_space<vmem>>, vector<128x256xbf16>
    %cst_13 = arith.constant dense<0.000000e+00> : vector<16x256xf32>
    %81 = tpu.matmul %79, %80, %cst_13 {dimension_numbers = #tpu.dot_dimension_numbers<[1], [0], [0], [1], [0, 0, 1, 1], [], []>} : vector<16x128xbf16>, vector<128x256xbf16>, vector<16x256xf32> -> vector<16x256xf32>
    %c0_14 = arith.constant 0 : index
    %c0_15 = arith.constant 0 : index
    %82 = vector.load %arg5[%c0_14, %c0_15] : memref<1x256xf32, #tpu.memory_space<vmem>>, vector<1x256xf32>
    %83 = vector.broadcast %82 : vector<1x256xf32> to vector<16x256xf32>
    %84 = arith.addf %81, %83 : vector<16x256xf32>
    %cst_16 = arith.constant 0.000000e+00 : f32
    %85 = vector.broadcast %cst_16 : f32 to vector<16x256xf32>
    %86 = arith.maximumf %84, %85 : vector<16x256xf32>
    %87 = vector.shape_cast %86 : vector<16x256xf32> to vector<1x16x256xf32>
    %c0_17 = arith.constant 0 : index
    %c0_18 = arith.constant 0 : index
    %c0_19 = arith.constant 0 : index
    %88 = vector.load %arg6[%c0_17, %c0_18, %c0_19] : memref<1x16x256xf32, #tpu.memory_space<vmem>>, vector<1x16x256xf32>
    tpu.vector_store %arg6[%c0_17, %c0_18, %c0_19], %87 {strides = array<i32>} : memref<1x16x256xf32, #tpu.memory_space<vmem>>, vector<1x16x256xf32>,
    return
  }
  func.func @transform_0(%arg0: i32) -> (i32, i32, i32) {
    %c0_i32 = arith.constant 0 : i32
    %c0_i32_0 = arith.constant 0 : i32
    %c0_i32_1 = arith.constant 0 : i32
    return %arg0, %c0_i32, %c0_i32_0 : i32, i32, i32
  }
  func.func @transform_1(%arg0: i32) -> (i32, i32, i32) {
    %c0_i32 = arith.constant 0 : i32
    %c0_i32_0 = arith.constant 0 : i32
    %c0_i32_1 = arith.constant 0 : i32
    %c0_i32_2 = arith.constant 0 : i32
    return %c0_i32, %c0_i32_0, %c0_i32_1 : i32, i32, i32
  }
  func.func @transform_2(%arg0: i32) -> (i32, i32) {
    %c0_i32 = arith.constant 0 : i32
    %c0_i32_0 = arith.constant 0 : i32
    %c0_i32_1 = arith.constant 0 : i32
    return %c0_i32, %c0_i32_0 : i32, i32
  }
  func.func @transform_3(%arg0: i32) -> (i32, i32) {
    %c0_i32 = arith.constant 0 : i32
    %c0_i32_0 = arith.constant 0 : i32
    %c0_i32_1 = arith.constant 0 : i32
    return %c0_i32, %c0_i32_0 : i32, i32
  }
  func.func @transform_4(%arg0: i32) -> (i32, i32) {
    %c0_i32 = arith.constant 0 : i32
    %c0_i32_0 = arith.constant 0 : i32
    %c0_i32_1 = arith.constant 0 : i32
    return %c0_i32, %c0_i32_0 : i32, i32
  }
  func.func @transform_5(%arg0: i32) -> (i32, i32, i32) {
    %c0_i32 = arith.constant 0 : i32
    %c0_i32_0 = arith.constant 0 : i32
    %c0_i32_1 = arith.constant 0 : i32
    return %arg0, %c0_i32, %c0_i32_0 : i32, i32, i32
  }
}

</mosaic_0001>

<llo_original>
// kernel: tpu_custom_call.1
$region0: #{tpu_custom_call.1}
  #allocation0 [shape = 'u32[]', space=smem, size = 0x4, offset = 0x4, fixed_abs, tag = 'smem constant byte address 0x4 - core index']
  #allocation1 [shape = 'u32[144,128]{1,0:T(1,128)}', space=vmem, size = 0x12000, scoped, tag = 'internal scratch']
  %s0 = inlined_call_operand.hbm [shape: f32[2,16,128], index: 0, kind: input, shape index: {}]
  %s1 = inlined_call_operand.hbm [shape: f32[3,3,128], index: 1, kind: input, shape index: {}]
  %s2 = inlined_call_operand.vmem [shape: f32[1,128], index: 2, kind: input, shape index: {}]
  %s3 = inlined_call_operand.hbm [shape: bf16[128,256], index: 3, kind: input, shape index: {}]
  %s4 = inlined_call_operand.vmem [shape: f32[1,256], index: 4, kind: input, shape index: {}]
  %s5 = inlined_call_operand.hbm [shape: f32[2,16,256], index: 5, kind: output, shape index: {}]
  %s6 = sld [smem:[#allocation0]]
  $region65: #{tpu_custom_call.1} parent=0
    _
  %s8 = ssub.s32 1, %s6
  %s9 = scalar_select 0, %s8, %s6
  $region1: #{tpu_custom_call.1} parent=0
    #allocation2 [shape = 'u8[16384]{0}', space=vmem, size = 0x4000, scoped, tag = 'input window, operand 0']
    #allocation3 [shape = 's32[2]{0}', space=sflag, size = 0x8, scoped, tag = 'scoped memory for tpu_custom_call.1']
    #allocation4 [shape = 's32[2]{0}', space=sflag, size = 0x8, scoped, tag = 'scoped memory for tpu_custom_call.1']
    #allocation5 [shape = 'u8[6144]{0}', space=vmem, size = 0x1800, scoped, tag = 'input window, operand 1, single buffered']
    #allocation6 [shape = 's32[1]{0}', space=sflag, size = 0x4, scoped, tag = 'scoped memory for tpu_custom_call.1']
    #allocation7 [shape = 'u8[65536]{0}', space=vmem, size = 0x10000, scoped, tag = 'input window, operand 3, single buffered']
    #allocation8 [shape = 'u8[32768]{0}', space=vmem, size = 0x8000, scoped, tag = 'output window, operand 0']
    %10 = vsyncpa [#allocation3], 0
    %s11 = scalar_lea.sflag [#allocation3], 1
    %12 = vsyncpa %s11, 0
    %13 = vsyncpa [#allocation6], 0
    %14 = vsyncpa [#allocation4], 0
    %s15 = scalar_lea.sflag [#allocation4], 1
    %16 = vsyncpa %s15, 0
    loop: start=0, step=1, limit=4
    $region2: #{tpu_custom_call.1} parent=1 // loop_pre_header
      _
    $region3: #{tpu_custom_call.1} parent=1 // loop_header
      %s18 = sphi 0, %s22
      %p19 = scmp.ge.s32.totalorder %s18, 4
      %s28 = sphi 0, %s30
      %s31 = sphi 0, %s28
      %s32 = sphi 0, %s31
      %s48 = sphi 0, %s32
      %s52 = sphi 0, %s52
      %s54 = sphi 0, %s52
      %s55 = sphi 0, %s54
      %s69 = sphi 0, %s55
      %s73 = sphi 0, %s73
      %s75 = sphi 0, %s73
      %s76 = sphi 0, %s75
      %s90 = sphi 0, %s76
      %s94 = sphi 0, %s94
      %s96 = sphi 0, %s94
      %s97 = sphi 0, %s96
      %s111 = sphi 0, %s97
      %s115 = sphi 0, %s115
      %s117 = sphi 0, %s115
      %s118 = sphi 0, %s117
      %s132 = sphi 0, %s118
      %s138 = sphi 0, %s140
      %s141 = sphi 0, %s138
      %s142 = sphi 0, %s141
      %s158 = sphi 0, %s142
    $region4: #{tpu_custom_call.1} parent=1 // loop_header_branch
      %21 = sbr.rel (%p19) target = $region8
    $region5: #{tpu_custom_call.1} parent=1 // loop_body
      %s23 = ssub.s32 %s18, 1
      %s24 = ssub.s32 %s18, 2
      %s25 = sadd.s32 %s18, 1
      %s26 = ssub.s32 %s18, %s25
      %p27 = scmp.eq.s32.totalorder %s26, 0
      %s29 = sadd.s32 %s28, 1
      %s30 = scalar_select %p27, %s28, %s29
      %p33 = pneg %p27
      %p34 = scmp.eq.s32.totalorder %s18, 1
      %p35 = por %p33, %p34
      %p36 = scmp.ne.s32.totalorder %s28, %s31
      %p37 = scmp.eq.s32.totalorder %s18, 0
      %p38 = por %p36, %p37
      %p39 = scmp.ne.s32.totalorder %s28, %s31
      %p40 = scmp.eq.s32.totalorder %s23, 1
      %p41 = por %p39, %p40
      %p42 = scmp.ne.s32.totalorder %s31, %s32
      %p43 = scmp.eq.s32.totalorder %s23, 0
      %p44 = por %p42, %p43
      %p45 = scmp.ne.s32.totalorder %s31, %s32
      %p46 = scmp.eq.s32.totalorder %s24, 1
      %p47 = por %p45, %p46
      %p49 = scmp.ne.s32.totalorder %s32, %s48
      %p50 = scmp.eq.s32.totalorder %s24, 0
      %p51 = por %p49, %p50
      %s53 = sadd.s32 %s52, 1
      %p56 = scmp.eq.s32.totalorder %s18, 1
      %p57 = scmp.ne.s32.totalorder %s52, %s54
      %p58 = scmp.eq.s32.totalorder %s18, 0
      %p59 = por %p57, %p58
      %p60 = scmp.ne.s32.totalorder %s52, %s54
      %p61 = scmp.eq.s32.totalorder %s23, 1
      %p62 = por %p60, %p61
      %p63 = scmp.ne.s32.totalorder %s54, %s55
      %p64 = scmp.eq.s32.totalorder %s23, 0
      %p65 = por %p63, %p64
      %p66 = scmp.ne.s32.totalorder %s54, %s55
      %p67 = scmp.eq.s32.totalorder %s24, 1
      %p68 = por %p66, %p67
      %p70 = scmp.ne.s32.totalorder %s55, %s69
      %p71 = scmp.eq.s32.totalorder %s24, 0
      %p72 = por %p70, %p71
      %s74 = sadd.s32 %s73, 1
      %p77 = scmp.eq.s32.totalorder %s18, 1
      %p78 = scmp.ne.s32.totalorder %s73, %s75
      %p79 = scmp.eq.s32.totalorder %s18, 0
      %p80 = por %p78, %p79
      %p81 = scmp.ne.s32.totalorder %s73, %s75
      %p82 = scmp.eq.s32.totalorder %s23, 1
      %p83 = por %p81, %p82
      %p84 = scmp.ne.s32.totalorder %s75, %s76
      %p85 = scmp.eq.s32.totalorder %s23, 0
      %p86 = por %p84, %p85
      %p87 = scmp.ne.s32.totalorder %s75, %s76
      %p88 = scmp.eq.s32.totalorder %s24, 1
      %p89 = por %p87, %p88
      %p91 = scmp.ne.s32.totalorder %s76, %s90
      %p92 = scmp.eq.s32.totalorder %s24, 0
      %p93 = por %p91, %p92
      %s95 = sadd.s32 %s94, 1
      %p98 = scmp.eq.s32.totalorder %s18, 1
      %p99 = scmp.ne.s32.totalorder %s94, %s96
      %p100 = scmp.eq.s32.totalorder %s18, 0
      %p101 = por %p99, %p100
      %p102 = scmp.ne.s32.totalorder %s94, %s96
      %p103 = scmp.eq.s32.totalorder %s23, 1
      %p104 = por %p102, %p103
      %p105 = scmp.ne.s32.totalorder %s96, %s97
      %p106 = scmp.eq.s32.totalorder %s23, 0
      %p107 = por %p105, %p106
      %p108 = scmp.ne.s32.totalorder %s96, %s97
      %p109 = scmp.eq.s32.totalorder %s24, 1
      %p110 = por %p108, %p109
      %p112 = scmp.ne.s32.totalorder %s97, %s111
      %p113 = scmp.eq.s32.totalorder %s24, 0
      %p114 = por %p112, %p113
      %s116 = sadd.s32 %s115, 1
      %p119 = scmp.eq.s32.totalorder %s18, 1
      %p120 = scmp.ne.s32.totalorder %s115, %s117
      %p121 = scmp.eq.s32.totalorder %s18, 0
      %p122 = por %p120, %p121
      %p123 = scmp.ne.s32.totalorder %s115, %s117
      %p124 = scmp.eq.s32.totalorder %s23, 1
      %p125 = por %p123, %p124
      %p126 = scmp.ne.s32.totalorder %s117, %s118
      %p127 = scmp.eq.s32.totalorder %s23, 0
      %p128 = por %p126, %p127
      %p129 = scmp.ne.s32.totalorder %s117, %s118
      %p130 = scmp.eq.s32.totalorder %s24, 1
      %p131 = por %p129, %p130
      %p133 = scmp.ne.s32.totalorder %s118, %s132
      %p134 = scmp.eq.s32.totalorder %s24, 0
      %p135 = por %p133, %p134
      %s136 = ssub.s32 %s18, %s25
      %p137 = scmp.eq.s32.totalorder %s136, 0
      %s139 = sadd.s32 %s138, 1
      %s140 = scalar_select %p137, %s138, %s139
      %p143 = pneg %p137
      %p144 = scmp.eq.s32.totalorder %s18, 1
      %p145 = por %p143, %p144
      %p146 = scmp.ne.s32.totalorder %s138, %s141
      %p147 = scmp.eq.s32.totalorder %s18, 0
      %p148 = por %p146, %p147
      %p149 = scmp.ne.s32.totalorder %s138, %s141
      %p150 = scmp.eq.s32.totalorder %s23, 1
      %p151 = por %p149, %p150
      %p152 = scmp.ne.s32.totalorder %s141, %s142
      %p153 = scmp.eq.s32.totalorder %s23, 0
      %p154 = por %p152, %p153
      %p155 = scmp.ne.s32.totalorder %s141, %s142
      %p156 = scmp.eq.s32.totalorder %s24, 1
      %p157 = por %p155, %p156
      %p159 = scmp.ne.s32.totalorder %s142, %s158
      %p160 = scmp.eq.s32.totalorder %s24, 0
      %p161 = por %p159, %p160
      %p162 = scmp.le.s32.totalorder 1, %s18
      %p163 = scmp.lt.s32.totalorder %s18, 3
      %p164 = pnand %p162, %p163
      %p165 = pneg %p164
      // Predicated region
      $region9: #{tpu_custom_call.1} parent=5 // pred_check
        _
      $region10: #{tpu_custom_call.1} parent=5 // pred_check_branch
        %167 = sbr.rel (%p164) target = $region12
      $region11: #{tpu_custom_call.1} parent=5 // pred_region
        %s168 = ssub.s32 %s18, 1
        // Predicated region
        $region13: #{tpu_custom_call.1} parent=11 // pred_check
          %p169 = pneg %p65
        $region14: #{tpu_custom_call.1} parent=11 // pred_check_branch
          %171 = sbr.rel (%p169) target = $region16
        $region15: #{tpu_custom_call.1} parent=11 // pred_region
          %s173 = ssub.s32 192, 192
          %174 = vsyncadd [#allocation6], %s173
          %s175 = sshll.u32 [#allocation5], 4
          %s176 = int_to_ptr.vmem [resolvable:$true] %s175
          %181 = dma.hbm_to_vmem [thread:$0]  %s1, 192, %s176, [#allocation6], 64, 64, 4
        $region16: #{tpu_custom_call.1} parent=11 // pred_fallthru
          _
        // Predicated region
        $region17: #{tpu_custom_call.1} parent=11 // pred_check
          %p182 = pneg %p86
        $region18: #{tpu_custom_call.1} parent=11 // pred_check_branch
          %184 = sbr.rel (%p182) target = $region20
        $region19: #{tpu_custom_call.1} parent=11 // pred_region
          _
        $region20: #{tpu_custom_call.1} parent=11 // pred_fallthru
          _
        // Predicated region
        $region21: #{tpu_custom_call.1} parent=11 // pred_check
          %p185 = pneg %p107
        $region22: #{tpu_custom_call.1} parent=11 // pred_check_branch
          %187 = sbr.rel (%p185) target = $region24
        $region23: #{tpu_custom_call.1} parent=11 // pred_region
          %s189 = ssub.s32 2048, 2048
          %190 = vsyncadd [#allocation6], %s189
          %s191 = sshll.u32 [#allocation7], 4
          %s192 = int_to_ptr.vmem [resolvable:$true] %s191
          %197 = dma.hbm_to_vmem [thread:$0]  %s3, 2048, %s192, [#allocation6], 128, 128, 8
        $region24: #{tpu_custom_call.1} parent=11 // pred_fallthru
          _
        // Predicated region
        $region25: #{tpu_custom_call.1} parent=11 // pred_check
          %p198 = pneg %p128
        $region26: #{tpu_custom_call.1} parent=11 // pred_check_branch
          %200 = sbr.rel (%p198) target = $region28
        $region27: #{tpu_custom_call.1} parent=11 // pred_region
          _
        $region28: #{tpu_custom_call.1} parent=11 // pred_fallthru
          _
      $region12: #{tpu_custom_call.1} parent=5 // pred_fallthru
        _
      %p201 = scmp.lt.s32.totalorder %s18, 2
      // Predicated region
      $region29: #{tpu_custom_call.1} parent=5 // pred_check
        %p202 = pneg %p201
      $region30: #{tpu_custom_call.1} parent=5 // pred_check_branch
        %204 = sbr.rel (%p202) target = $region32
      $region31: #{tpu_custom_call.1} parent=5 // pred_region
        // Predicated region
        $region33: #{tpu_custom_call.1} parent=31 // pred_check
          %p205 = pneg %p38
        $region34: #{tpu_custom_call.1} parent=31 // pred_check_branch
          %207 = sbr.rel (%p205) target = $region36
        $region35: #{tpu_custom_call.1} parent=31 // pred_region
          %s208 = sand.u32 %s28, 1
          %s209 = scalar_lea.sflag [#allocation3], %s208
          %s210 = sand.u32 %s28, 1
          %s211 = smul.addr %s210, 16
          %s212 = scalar_lea.vmem [#allocation2], %s211
          %s214 = ssub.s32 256, 256
          %215 = vsyncadd %s209, %s214
          %s216 = smul.addr %s18, 2
          %s217 = smul.addr %s216, 128
          %s218 = scalar_lea.hbm %s0, %s217
          %s219 = sshll.u32 %s212, 4
          %s220 = int_to_ptr.vmem [resolvable:$true] %s219
          %225 = dma.hbm_to_vmem [thread:$0]  %s218, 256, %s220, %s209, 128, 128, 8
        $region36: #{tpu_custom_call.1} parent=31 // pred_fallthru
          _
      $region32: #{tpu_custom_call.1} parent=5 // pred_fallthru
        _
      %p226 = scmp.le.s32.totalorder 1, %s18
      %p227 = scmp.lt.s32.totalorder %s18, 3
      %p228 = pnand %p226, %p227
      %p229 = pneg %p228
      // Predicated region
      $region37: #{tpu_custom_call.1} parent=5 // pred_check
        _
      $region38: #{tpu_custom_call.1} parent=5 // pred_check_branch
        %231 = sbr.rel (%p228) target = $region40
      $region39: #{tpu_custom_call.1} parent=5 // pred_region
        %s232 = ssub.s32 %s18, 1
        %s233 = sand.u32 %s31, 1
        %s234 = scalar_lea.sflag [#allocation3], %s233
        %s235 = sand.u32 %s31, 1
        %s236 = smul.addr %s235, 16
        %s237 = scalar_lea.vmem [#allocation2], %s236
        // Predicated region
        $region41: #{tpu_custom_call.1} parent=39 // pred_check
          %p238 = pneg %p44
        $region42: #{tpu_custom_call.1} parent=39 // pred_check_branch
          %240 = sbr.rel (%p238) target = $region44
        $region43: #{tpu_custom_call.1} parent=39 // pred_region
          %241 = dma.done %s234, 256
        $region44: #{tpu_custom_call.1} parent=39 // pred_fallthru
          _
        // Predicated region
        $region45: #{tpu_custom_call.1} parent=39 // pred_check
          %p242 = pneg %p65
        $region46: #{tpu_custom_call.1} parent=39 // pred_check_branch
          %244 = sbr.rel (%p242) target = $region48
        $region47: #{tpu_custom_call.1} parent=39 // pred_region
          %245 = dma.done [#allocation6], 192
        $region48: #{tpu_custom_call.1} parent=39 // pred_fallthru
          _
        // Predicated region
        $region49: #{tpu_custom_call.1} parent=39 // pred_check
          %p246 = pneg %p107
        $region50: #{tpu_custom_call.1} parent=39 // pred_check_branch
          %248 = sbr.rel (%p246) target = $region52
        $region51: #{tpu_custom_call.1} parent=39 // pred_region
          %249 = dma.done [#allocation6], 2048
        $region52: #{tpu_custom_call.1} parent=39 // pred_fallthru
          _
        %s250 = sand.u32 %s31, 1
        %s251 = scalar_lea.sflag [#allocation3], %s250
        %s252 = sand.u32 %s31, 1
        %s253 = smul.addr %s252, 16
        %s254 = scalar_lea.vmem [#allocation2], %s253
        %p255 = pneg %p44
        %p256 = pneg %p41
        %p257 = pneg %p65
        %p258 = pneg %p62
        %p259 = pneg %p86
        %p260 = pneg %p83
        %p261 = pneg %p107
        %p262 = pneg %p104
        %p263 = pneg %p128
        %p264 = pneg %p125
        %p265 = pneg %p154
        %p266 = pneg %p151
        %s267 = sand.u32 %s141, 1
        %s268 = scalar_lea.sflag [#allocation4], %s267
        %s269 = sand.u32 %s141, 1
        %s270 = smul.addr %s269, 32
        %s271 = scalar_lea.vmem [#allocation8], %s270
        %v273 = vld [vmem:[%s237] sm:$0xff]
        %v274 = vld [vmem:[%s237 + $0x8] sm:$0xff]
        %v275 = vld [vmem:[#allocation5] sm:$0x7]
        %v276 = vld [vmem:[#allocation5 + $0x4] sm:$0x7]
        %v277 = vld [vmem:[#allocation5 + $0x8] sm:$0x7]
        %v278 = vld [vmem:[%s2] sm:$0x1]
        %279 = vrot.lane.b32.xlu0 %v273, 8
        %v280 = vpop.permute.xlu0 %279
        %281 = vrot.lane.b32.xlu0 %v274, 8
        %v282 = vpop.permute.xlu0 %281
        %283 = vrot.lane.b32.xlu0 %v273, 120
        %v284 = vpop.permute.xlu0 %283
        %285 = vrot.lane.b32.xlu0 %v274, 120
        %v286 = vpop.permute.xlu0 %285
        %v287 = vlaneseq
        %v288 = vshrl.u32 %v287, 7
        %v289 = vadd.s32 %v288, 8
        %vm290 = vcmp.ge.s32.totalorder %v288, 1
        %vm291 = vcmp.ge.s32.totalorder %v289, 1
        %vm292 = vcmp.lt.s32.totalorder %v288, 15
        %vm293 = vcmp.lt.s32.totalorder %v289, 15
        %v294 = vlaneseq
        %v295 = vshrl.u32 %v294, 7
        %v296 = vsub.s32 0, %v295
        %v297 = vrot.slane %v275, %v296
        %v298 = vmul.f32 %v280, %v297
        %v299 = vmul.f32 %v282, %v297
        %v300 = vlaneseq
        %v301 = vshrl.u32 %v300, 7
        %v302 = vsub.s32 1, %v301
        %v303 = vrot.slane %v275, %v302
        %v304 = vmul.f32 %v273, %v303
        %v305 = vmul.f32 %v274, %v303
        %v306 = vadd.f32 %v298, %v304
        %v307 = vadd.f32 %v299, %v305
        %v308 = vlaneseq
        %v309 = vshrl.u32 %v308, 7
        %v310 = vsub.s32 2, %v309
        %v311 = vrot.slane %v275, %v310
        %v312 = vmul.f32 %v284, %v311
        %v313 = vmul.f32 %v286, %v311
        %v314 = vadd.f32 %v306, %v312
        %v315 = vadd.f32 %v307, %v313
        %v316 = vrot.slane %v314, 7
        %v317 = vrot.slane %v315, 7
        %vm318 = vcmp.lt.s32.totalorder %v288, 1
        %v319 = vsel %vm318, %v316, %v317
        %v320 = vsel %vm318, %v317, %v316
        %v321 = vsel %vm290, 1, 0
        %v322 = vsel %vm291, 1, 0
        %vm323 = vcmp.eq.s32.totalorder %v321, 1
        %vm324 = vcmp.eq.s32.totalorder %v322, 1
        %v325 = vsel %vm323, %v320, 0.0
        %v326 = vsel %vm324, %v319, 0.0
        %v327 = vlaneseq
        %v328 = vshrl.u32 %v327, 7
        %v329 = vsub.s32 0, %v328
        %v330 = vrot.slane %v276, %v329
        %v331 = vmul.f32 %v280, %v330
        %v332 = vmul.f32 %v282, %v330
        %v333 = vlaneseq
        %v334 = vshrl.u32 %v333, 7
        %v335 = vsub.s32 1, %v334
        %v336 = vrot.slane %v276, %v335
        %v337 = vmul.f32 %v273, %v336
        %v338 = vmul.f32 %v274, %v336
        %v339 = vadd.f32 %v331, %v337
        %v340 = vadd.f32 %v332, %v338
        %v341 = vlaneseq
        %v342 = vshrl.u32 %v341, 7
        %v343 = vsub.s32 2, %v342
        %v344 = vrot.slane %v276, %v343
        %v345 = vmul.f32 %v284, %v344
        %v346 = vmul.f32 %v286, %v344
        %v347 = vadd.f32 %v339, %v345
        %v348 = vadd.f32 %v340, %v346
        %v349 = vadd.f32 %v325, %v347
        %v350 = vadd.f32 %v326, %v348
        %v351 = vlaneseq
        %v352 = vshrl.u32 %v351, 7
        %v353 = vsub.s32 0, %v352
        %v354 = vrot.slane %v277, %v353
        %v355 = vmul.f32 %v280, %v354
        %v356 = vmul.f32 %v282, %v354
        %v357 = vlaneseq
        %v358 = vshrl.u32 %v357, 7
        %v359 = vsub.s32 1, %v358
        %v360 = vrot.slane %v277, %v359
        %v361 = vmul.f32 %v273, %v360
        %v362 = vmul.f32 %v274, %v360
        %v363 = vadd.f32 %v355, %v361
        %v364 = vadd.f32 %v356, %v362
        %v365 = vlaneseq
        %v366 = vshrl.u32 %v365, 7
        %v367 = vsub.s32 2, %v366
        %v368 = vrot.slane %v277, %v367
        %v369 = vmul.f32 %v284, %v368
        %v370 = vmul.f32 %v286, %v368
        %v371 = vadd.f32 %v363, %v369
        %v372 = vadd.f32 %v364, %v370
        %v373 = vrot.slane %v371, 1
        %v374 = vrot.slane %v372, 1
        %vm375 = vcmp.lt.s32.totalorder %v288, 7
        %v376 = vsel %vm375, %v373, %v374
        %v377 = vsel %vm375, %v374, %v373
        %v378 = vsel %vm292, 1, 0
        %v379 = vsel %vm293, 1, 0
        %vm380 = vcmp.eq.s32.totalorder %v378, 1
        %vm381 = vcmp.eq.s32.totalorder %v379, 1
        %v382 = vsel %vm380, %v376, 0.0
        %v383 = vsel %vm381, %v377, 0.0
        %v384 = vadd.f32 %v349, %v382
        %v385 = vadd.f32 %v350, %v383
        %v387 = vlaneseq
        %v388 = vshrl.u32 %v387, 7
        %v389 = vsub.s32 0, %v388
        %v390 = vrot.slane %v278, %v389
        %v392 = vadd.f32 %v384, %v390
        %v393 = vadd.f32 %v385, %v390
        %v394 = vmax.f32 %v392, 0.0
        %v395 = vmax.f32 %v393, 0.0
        %v396 = vpack.c.bf16 %v395, %v394
        %v397 = vld [vmem:[#allocation7] sm:$0xff]
        %v398 = vld [vmem:[#allocation7 + $0x8] sm:$0xff]
        %v399 = vld [vmem:[#allocation7 + $0x10] sm:$0xff]
        %v400 = vld [vmem:[#allocation7 + $0x18] sm:$0xff]
        %v401 = vld [vmem:[#allocation7 + $0x20] sm:$0xff]
        %v402 = vld [vmem:[#allocation7 + $0x28] sm:$0xff]
        %v403 = vld [vmem:[#allocation7 + $0x30] sm:$0xff]
        %v404 = vld [vmem:[#allocation7 + $0x38] sm:$0xff]
        %v405 = vld [vmem:[#allocation7 + $0x40] sm:$0xff]
        %v406 = vld [vmem:[#allocation7 + $0x48] sm:$0xff]
        %v407 = vld [vmem:[#allocation7 + $0x50] sm:$0xff]
        %v408 = vld [vmem:[#allocation7 + $0x58] sm:$0xff]
        %v409 = vld [vmem:[#allocation7 + $0x60] sm:$0xff]
        %v410 = vld [vmem:[#allocation7 + $0x68] sm:$0xff]
        %v411 = vld [vmem:[#allocation7 + $0x70] sm:$0xff]
        %v412 = vld [vmem:[#allocation7 + $0x78] sm:$0xff]
        %v413 = vld [vmem:[%s4] sm:$0x3]
        %v415 = vlaneseq
        %v416 = vshrl.u32 %v415, 7
        %v417 = vsub.s32 0, %v416
        %v418 = vrot.slane %v413, %v417
        %v419 = vlaneseq
        %v420 = vshrl.u32 %v419, 7
        %v421 = vsub.s32 1, %v420
        %v422 = vrot.slane %v413, %v421
        %v441 = vunpack.c.l.b16 %v397
        %v442 = vunpack.c.h.b16 %v397
        %v443 = vunpack.c.l.b16 %v398
        %v444 = vunpack.c.h.b16 %v398
        %v445 = vunpack.c.l.b16 %v399
        %v446 = vunpack.c.h.b16 %v399
        %v447 = vunpack.c.l.b16 %v400
        %v448 = vunpack.c.h.b16 %v400
        %v449 = vunpack.c.l.b16 %v401
        %v450 = vunpack.c.h.b16 %v401
        %v451 = vunpack.c.l.b16 %v402
        %v452 = vunpack.c.h.b16 %v402
        %v453 = vunpack.c.l.b16 %v403
        %v454 = vunpack.c.h.b16 %v403
        %v455 = vunpack.c.l.b16 %v404
        %v456 = vunpack.c.h.b16 %v404
        %v457 = vunpack.c.l.b16 %v405
        %v458 = vunpack.c.h.b16 %v405
        %v459 = vunpack.c.l.b16 %v406
        %v460 = vunpack.c.h.b16 %v406
        %v461 = vunpack.c.l.b16 %v407
        %v462 = vunpack.c.h.b16 %v407
        %v463 = vunpack.c.l.b16 %v408
        %v464 = vunpack.c.h.b16 %v408
        %v465 = vunpack.c.l.b16 %v409
        %v466 = vunpack.c.h.b16 %v409
        %v467 = vunpack.c.l.b16 %v410
        %v468 = vunpack.c.h.b16 %v410
        %v469 = vunpack.c.l.b16 %v411
        %v470 = vunpack.c.h.b16 %v411
        %v471 = vunpack.c.l.b16 %v412
        %v472 = vunpack.c.h.b16 %v412
        %v473 = vpack.c.b16 %v443, %v441
        %v474 = vpack.c.b16 %v444, %v442
        %v475 = vpack.c.b16 %v447, %v445
        %v476 = vpack.c.b16 %v448, %v446
        %v477 = vpack.c.b16 %v451, %v449
        %v478 = vpack.c.b16 %v452, %v450
        %v479 = vpack.c.b16 %v455, %v453
        %v480 = vpack.c.b16 %v456, %v454
        %v481 = vpack.c.b16 %v459, %v457
        %v482 = vpack.c.b16 %v460, %v458
        %v483 = vpack.c.b16 %v463, %v461
        %v484 = vpack.c.b16 %v464, %v462
        %v485 = vpack.c.b16 %v467, %v465
        %v486 = vpack.c.b16 %v468, %v466
        %v487 = vpack.c.b16 %v471, %v469
        %v488 = vpack.c.b16 %v472, %v470
        %505 = vmatprep.subr.bf16.mxu0 %v474
        %506 = vmatpush1.bf16.msra.mxu0 %v473
        %507 = vmatprep.subr.bf16.mxu0 %v476
        %508 = vmatpush1.bf16.msra.mxu0 %v475
        %509 = vmatprep.subr.bf16.mxu0 %v478
        %510 = vmatpush1.bf16.msra.mxu0 %v477
        %511 = vmatprep.subr.bf16.mxu0 %v480
        %512 = vmatpush1.bf16.msra.mxu0 %v479
        %513 = vmatprep.subr.bf16.mxu0 %v482
        %514 = vmatpush1.bf16.msra.mxu0 %v481
        %515 = vmatprep.subr.bf16.mxu0 %v484
        %516 = vmatpush1.bf16.msra.mxu0 %v483
        %517 = vmatprep.subr.bf16.mxu0 %v486
        %518 = vmatpush1.bf16.msra.mxu0 %v485
        %519 = vmatprep.subr.bf16.mxu0 %v488
        %520 = vmatpush1.bf16.msra.mxu0 %v487
        %521 = vmatprep.subr.bf16.mxu0 0
        %522 = vmatpush1.bf16.msra.mxu0 0
        %523 = vmatprep.subr.bf16.mxu0 0
        %524 = vmatpush1.bf16.msra.mxu0 0
        %525 = vmatprep.subr.bf16.mxu0 0
        %526 = vmatpush1.bf16.msra.mxu0 0
        %527 = vmatprep.subr.bf16.mxu0 0
        %528 = vmatpush1.bf16.msra.mxu0 0
        %529 = vmatprep.subr.bf16.mxu0 0
        %530 = vmatpush1.bf16.msra.mxu0 0
        %531 = vmatprep.subr.bf16.mxu0 0
        %532 = vmatpush1.bf16.msra.mxu0 0
        %533 = vmatprep.subr.bf16.mxu0 0
        %534 = vmatpush1.bf16.msra.mxu0 0
        %535 = vmatprep.subr.bf16.mxu0 0
        %536 = vmatpush1.bf16.msra.mxu0 0
        %537 = vmatprep.mubr.bf16.mxu0 0
        %538 = vmatmul.mubr.bf16.gmra.mrb[0].mxu0 %v396
        %v539 = vpop.f32.mrb[0].mxu0
        %v540 = vadd.f32 %v418, %v539
        %v541 = vpop.f32.mrb[0].mxu0
        %v542 = vadd.f32 %v422, %v541
        %v543 = vpop.f32.mrb[0].mxu0
        %v544 = vadd.f32 %v418, %v543
        %v545 = vpop.f32.mrb[0].mxu0
        %v546 = vadd.f32 %v422, %v545
        %547 = vdwg.mxu0
        %v548 = vmax.f32 %v540, 0.0
        %v549 = vmax.f32 %v542, 0.0
        %v550 = vmax.f32 %v544, 0.0
        %v551 = vmax.f32 %v546, 0.0
        %552 = vst [vmem:[%s271] sm:$0xff] %v548
        %553 = vst [vmem:[%s271 + $0x8] sm:$0xff] %v549
        %554 = vst [vmem:[%s271 + $0x10] sm:$0xff] %v550
        %555 = vst [vmem:[%s271 + $0x18] sm:$0xff] %v551
        %s556 = sand.u32 %s141, 1
        %s557 = scalar_lea.sflag [#allocation4], %s556
        %s558 = sand.u32 %s141, 1
        %s559 = smul.addr %s558, 32
        %s560 = scalar_lea.vmem [#allocation8], %s559
        // Predicated region
        $region53: #{tpu_custom_call.1} parent=39 // pred_check
          %p561 = pneg %p151
        $region54: #{tpu_custom_call.1} parent=39 // pred_check_branch
          %563 = sbr.rel (%p561) target = $region56
        $region55: #{tpu_custom_call.1} parent=39 // pred_region
          %s565 = ssub.s32 512, 512
          %566 = vsyncadd %s557, %s565
          %s567 = smul.addr %s23, 4
          %s568 = smul.addr %s567, 128
          %s569 = scalar_lea.hbm %s5, %s568
          %s570 = sshll.u32 %s560, 4
          %s571 = int_to_ptr.vmem [resolvable:$true] %s570
          %576 = dma.vmem_to_hbm [thread:$0]  %s571, 512, %s569, %s557, 256, 256, 16
        $region56: #{tpu_custom_call.1} parent=39 // pred_fallthru
          _
      $region40: #{tpu_custom_call.1} parent=5 // pred_fallthru
        _
      %p577 = scmp.le.s32.totalorder 2, %s18
      // Predicated region
      $region57: #{tpu_custom_call.1} parent=5 // pred_check
        %p578 = pneg %p577
      $region58: #{tpu_custom_call.1} parent=5 // pred_check_branch
        %580 = sbr.rel (%p578) target = $region60
      $region59: #{tpu_custom_call.1} parent=5 // pred_region
        %s581 = ssub.s32 %s18, 2
        // Predicated region
        $region61: #{tpu_custom_call.1} parent=59 // pred_check
          %p582 = pneg %p157
        $region62: #{tpu_custom_call.1} parent=59 // pred_check_branch
          %584 = sbr.rel (%p582) target = $region64
        $region63: #{tpu_custom_call.1} parent=59 // pred_region
          %s585 = sand.u32 %s142, 1
          %s586 = scalar_lea.sflag [#allocation4], %s585
          %s587 = sand.u32 %s142, 1
          %s588 = smul.addr %s587, 32
          %s589 = scalar_lea.vmem [#allocation8], %s588
          %590 = dma.done %s586, 512
        $region64: #{tpu_custom_call.1} parent=59 // pred_fallthru
          _
      $region60: #{tpu_custom_call.1} parent=5 // pred_fallthru
        _
    $region6: #{tpu_custom_call.1} parent=1 // loop_footer
      %s22 = sadd.s32 1, %s18
    $region7: #{tpu_custom_call.1} parent=1 // loop_footer_branch
      %17 = sbr.rel target = $region3
    $region8: #{tpu_custom_call.1} parent=1 // loop_exit
      _
    %591 = vsyncpa [#allocation3], 1
    %s592 = scalar_lea.sflag [#allocation3], 1
    %593 = vsyncpa %s592, 1
    %594 = vsyncpa [#allocation6], 1
    %595 = vsyncpa [#allocation4], 1
    %s596 = scalar_lea.sflag [#allocation4], 1
    %597 = vsyncpa %s596, 1

</llo_original>
